<compile_context>
chip_gen: v7x
topology: tpu7x:2x2x1
jax: 0.10.0
libtpu: 0.0.40
codegen_flags: <defaults>
</compile_context>

<pallas_src>
import jax
import jax.numpy as jnp
from jax import lax
from jax.experimental import pallas as pl
from jax.experimental.pallas import tpu as pltpu


VOCAB_CHUNK = 32  # one-hot counts rows built per step (keeps vreg set small)


def _round_up(x, m):
    return (x + m - 1) // m * m


def linear_kernel(idxT_ref, table_ref, bias_ref, out_ref):
    """One batch tile.

    idxT_ref:  (F, tb)      int32  field-major indices (batch on lanes)
    table_ref: (NC, D, VC)  f32    vocab-chunked, transposed embedding table
    bias_ref:  (D, 1)       f32
    out_ref:   (D, tb)      f32    lane-dense output slab (batch on lanes)
    """
    F, tb = idxT_ref.shape
    NC, D, VC = table_ref.shape

    base = lax.broadcasted_iota(jnp.int32, (VC, tb), 0)      # hoisted chunk iota
    acc = jnp.zeros((D, tb), jnp.float32)

    for c in range(NC):                                      # static unroll: vocab chunks
        vocab_c = base + c * VC                              # (VC, tb)
        counts = jnp.zeros((VC, tb), jnp.int32)
        for f in range(F):                                   # static unroll: fields
            row = idxT_ref[f:f + 1, :]                       # (1, tb), sublane-broadcast
            counts = counts + (row == vocab_c)               # int32 accumulation (no f32 pass)
        # sum_f table[idx[b,f], :] over this vocab chunk == table_c @ counts
        acc = acc + jnp.dot(table_ref[c],                    # (D, VC)
                            counts.astype(jnp.float32),      # single cast per chunk
                            preferred_element_type=jnp.float32)

    out_ref[...] = acc + bias_ref[...]                       # bias broadcast on lanes


def _pick_batch_tile(B, tb_req):
    """Multiple of 128 lanes; keep >= 2 grid steps when the batch allows so
    both v7x TensorCores get work (grid steps shard under "parallel")."""
    B128 = _round_up(max(B, 1), 128)
    if B128 >= 256:
        tb = min(_round_up(tb_req, 128), (B128 // 2) // 128 * 128)
        return max(tb, 128)
    return 128


def linear_forward(x, table, bias, *, tb=512, interpret=False):
    """x: (B, F) int indices in [0, V); table: (V, D) f32; bias: (D,) f32 -> (B, D)."""
    B, F = x.shape
    V, D = table.shape

    VC = VOCAB_CHUNK
    V_pad = _round_up(V, VC)
    NC = V_pad // VC

    tb = _pick_batch_tile(B, tb)
    B_pad = _round_up(B, tb)

    # Pad the batch (pad rows use index 0, a valid row, sliced off at the end)
    # and transpose so batch is on lanes. Done as one fused pad+transpose pass.
    xT = jnp.transpose(
        jnp.pad(x.astype(jnp.int32), ((0, B_pad - B), (0, 0))))        # (F, B_pad)

    # Table: (V, D) -> padded, vocab-chunked, transposed (NC, D, VC). Padded
    # vocab rows are zero and in-range indices never match them anyway.
    tableC = jnp.transpose(
        jnp.pad(table.astype(jnp.float32), ((0, V_pad - V), (0, 0)))
        .reshape(NC, VC, D), (0, 2, 1))                                # (NC, D, VC)
    bias2 = bias.astype(jnp.float32).reshape(D, 1)

    # Rough VMEM need: single-buffered resident table + double-buffered
    # idx / out tiles. Only raise the scoped limit when it actually matters
    # (v5e default scope is 16 MiB; v7x physical VMEM is 64 MiB).
    table_bytes = NC * max(D, 8) * max(VC, 128) * 4
    tile_bytes = 2 * 2 * (F * tb * 4 + D * tb * 4)
    need = table_bytes + tile_bytes + (1 << 20)
    params = {"dimension_semantics": ("parallel",)}
    if need > 12 * 1024 * 1024:
        params["vmem_limit_bytes"] = min(int(need * 2), 48 * 1024 * 1024)

    def build(single_buffer_resident):
        resident_kwargs = (
            {"pipeline_mode": pl.Buffered(1)} if single_buffer_resident else {})
        return pl.pallas_call(
            linear_kernel,
            out_shape=jax.ShapeDtypeStruct((D, B_pad), jnp.float32),
            grid=(B_pad // tb,),
            in_specs=[
                pl.BlockSpec((F, tb), lambda i: (0, i)),               # index tile
                pl.BlockSpec((NC, D, VC), lambda i: (0, 0, 0),         # resident table
                             **resident_kwargs),
                pl.BlockSpec((D, 1), lambda i: (0, 0),                 # bias
                             **resident_kwargs),
            ],
            out_specs=pl.BlockSpec((D, tb), lambda i: (0, i)),
            compiler_params=pltpu.CompilerParams(**params),
            interpret=interpret,
        )

    # Prefer single-buffering the constant-index_map operands; fall back to the
    # default double-buffered pipeline if Buffered(1) is rejected by this build.
    try:
        outT = jax.block_until_ready(build(True)(xT, tableC, bias2))
    except Exception:
        outT = jax.block_until_ready(build(False)(xT, tableC, bias2))

    return jnp.transpose(outT)[:B]                                     # (B, D)


def _make_params(key, num_feat, output_dim):
    V = num_feat + 1
    bound = (6.0 / (output_dim + V)) ** 0.5   # torch xavier_uniform_ on (V, D)
    table = jax.random.uniform(
        key, (V, output_dim), dtype=jnp.float32, minval=-bound, maxval=bound)
    bias = jnp.zeros((output_dim,), dtype=jnp.float32)
    return table, bias


if __name__ == "__main__":
    key = jax.random.PRNGKey(0)

    # Test 1: small shapes matching the original module's typical use
    # (output_dim=1). Single grid step, 2 vocab chunks.
    num_feat, output_dim, batch, num_fields = 32, 1, 8, 8
    k_w, k_x, key = jax.random.split(key, 3)
    table, bias = _make_params(k_w, num_feat, output_dim)
    x = jax.random.randint(k_x, (batch, num_fields), 0, num_feat + 1,
                           dtype=jnp.int32)
    out = jax.block_until_ready(linear_forward(x, table, bias))
    ref = jnp.sum(table[x], axis=1) + bias
    assert out.shape == (batch, output_dim)
    assert jnp.allclose(out, ref, atol=1e-5, rtol=1e-5)

    # Test 2: batch not divisible by the tile, multi-dim output; exercises the
    # batch padding path and a 2-step grid (tb capped to 128).
    num_feat, output_dim, batch, num_fields = 100, 4, 200, 10
    k_w, k_x, key = jax.random.split(key, 3)
    table, bias = _make_params(k_w, num_feat, output_dim)
    bias = bias + 0.5
    x = jax.random.randint(k_x, (batch, num_fields), 0, num_feat + 1,
                           dtype=jnp.int32)
    out = jax.block_until_ready(linear_forward(x, table, bias))
    ref = jnp.sum(table[x], axis=1) + bias
    assert out.shape == (batch, output_dim)
    assert jnp.allclose(out, ref, atol=1e-5, rtol=1e-5)

    # Test 3: larger batch / vocab; exercises tb=512 tiles and many vocab chunks.
    num_feat, output_dim, batch, num_fields = 299, 8, 1000, 16
    k_w, k_x, key = jax.random.split(key, 3)
    table, bias = _make_params(k_w, num_feat, output_dim)
    x = jax.random.randint(k_x, (batch, num_fields), 0, num_feat + 1,
                           dtype=jnp.int32)
    out = jax.block_until_ready(linear_forward(x, table, bias))
    ref = jnp.sum(table[x], axis=1) + bias
    assert out.shape == (batch, output_dim)
    assert jnp.allclose(out, ref, atol=1e-5, rtol=1e-5)

    print("KERNEL_OK")
</pallas_src>

<mosaic_0001>
module attributes {stable_mosaic.version = 11 : i64} {
  func.func @linear_kernel(%arg0: i32, %arg1: memref<8x128xi32, #tpu.memory_space<vmem>>, %arg2: memref<2x1x32xf32, #tpu.memory_space<vmem>>, %arg3: memref<1x1xf32, #tpu.memory_space<vmem>>, %arg4: memref<1x128xf32, #tpu.memory_space<vmem>>) attributes {dimension_semantics = [#tpu.dimension_semantics<parallel>], iteration_bounds = array<i64: 1>, scalar_prefetch = 0 : i64, scratch_operands = 0 : i64, tpu.core_type = #tpu.core_type<tc>, window_params = [{transform_indices = @transform_0, window_bounds = array<i64: 8, 128>}, {pipeline_mode = #tpu.pipeline_mode<synchronous>, transform_indices = @transform_1, window_bounds = array<i64: 2, 1, 32>}, {pipeline_mode = #tpu.pipeline_mode<synchronous>, transform_indices = @transform_2, window_bounds = array<i64: 1, 1>}, {transform_indices = @transform_3, window_bounds = array<i64: 1, 128>}]} {
    %0 = tpu.iota {dimensions = array<i32: 0>} : vector<32x128xi32>
    %cst = arith.constant 0.000000e+00 : f32
    %1 = vector.broadcast %cst : f32 to vector<1x128xf32>
    %c0_i32 = arith.constant 0 : i32
    %2 = vector.broadcast %c0_i32 : i32 to vector<32x128xi32>
    %3 = arith.addi %0, %2 : vector<32x128xi32>
    %c0_i32_0 = arith.constant 0 : i32
    %4 = vector.broadcast %c0_i32_0 : i32 to vector<32x128xi32>
    %c0 = arith.constant 0 : index
    %c0_1 = arith.constant 0 : index
    %5 = vector.load %arg1[%c0, %c0_1] : memref<8x128xi32, #tpu.memory_space<vmem>>, vector<1x128xi32>
    %6 = vector.broadcast %5 : vector<1x128xi32> to vector<32x128xi32>
    %7 = arith.cmpi eq, %6, %3 : vector<32x128xi32>
    %8 = arith.extui %7 : vector<32x128xi1> to vector<32x128xi32>
    %9 = arith.addi %4, %8 : vector<32x128xi32>
    %c1 = arith.constant 1 : index
    %c0_2 = arith.constant 0 : index
    %10 = vector.load %arg1[%c1, %c0_2] : memref<8x128xi32, #tpu.memory_space<vmem>>, vector<1x128xi32>
    %11 = vector.broadcast %10 : vector<1x128xi32> to vector<32x128xi32>
    %12 = arith.cmpi eq, %11, %3 : vector<32x128xi32>
    %13 = arith.extui %12 : vector<32x128xi1> to vector<32x128xi32>
    %14 = arith.addi %9, %13 : vector<32x128xi32>
    %c2 = arith.constant 2 : index
    %c0_3 = arith.constant 0 : index
    %15 = vector.load %arg1[%c2, %c0_3] : memref<8x128xi32, #tpu.memory_space<vmem>>, vector<1x128xi32>
    %16 = vector.broadcast %15 : vector<1x128xi32> to vector<32x128xi32>
    %17 = arith.cmpi eq, %16, %3 : vector<32x128xi32>
    %18 = arith.extui %17 : vector<32x128xi1> to vector<32x128xi32>
    %19 = arith.addi %14, %18 : vector<32x128xi32>
    %c3 = arith.constant 3 : index
    %c0_4 = arith.constant 0 : index
    %20 = vector.load %arg1[%c3, %c0_4] : memref<8x128xi32, #tpu.memory_space<vmem>>, vector<1x128xi32>
    %21 = vector.broadcast %20 : vector<1x128xi32> to vector<32x128xi32>
    %22 = arith.cmpi eq, %21, %3 : vector<32x128xi32>
    %23 = arith.extui %22 : vector<32x128xi1> to vector<32x128xi32>
    %24 = arith.addi %19, %23 : vector<32x128xi32>
    %c4 = arith.constant 4 : index
    %c0_5 = arith.constant 0 : index
    %25 = vector.load %arg1[%c4, %c0_5] : memref<8x128xi32, #tpu.memory_space<vmem>>, vector<1x128xi32>
    %26 = vector.broadcast %25 : vector<1x128xi32> to vector<32x128xi32>
    %27 = arith.cmpi eq, %26, %3 : vector<32x128xi32>
    %28 = arith.extui %27 : vector<32x128xi1> to vector<32x128xi32>
    %29 = arith.addi %24, %28 : vector<32x128xi32>
    %c5 = arith.constant 5 : index
    %c0_6 = arith.constant 0 : index
    %30 = vector.load %arg1[%c5, %c0_6] : memref<8x128xi32, #tpu.memory_space<vmem>>, vector<1x128xi32>
    %31 = vector.broadcast %30 : vector<1x128xi32> to vector<32x128xi32>
    %32 = arith.cmpi eq, %31, %3 : vector<32x128xi32>
    %33 = arith.extui %32 : vector<32x128xi1> to vector<32x128xi32>
    %34 = arith.addi %29, %33 : vector<32x128xi32>
    %c6 = arith.constant 6 : index
    %c0_7 = arith.constant 0 : index
    %35 = vector.load %arg1[%c6, %c0_7] : memref<8x128xi32, #tpu.memory_space<vmem>>, vector<1x128xi32>
    %36 = vector.broadcast %35 : vector<1x128xi32> to vector<32x128xi32>
    %37 = arith.cmpi eq, %36, %3 : vector<32x128xi32>
    %38 = arith.extui %37 : vector<32x128xi1> to vector<32x128xi32>
    %39 = arith.addi %34, %38 : vector<32x128xi32>
    %c7 = arith.constant 7 : index
    %c0_8 = arith.constant 0 : index
    %40 = vector.load %arg1[%c7, %c0_8] : memref<8x128xi32, #tpu.memory_space<vmem>>, vector<1x128xi32>
    %41 = vector.broadcast %40 : vector<1x128xi32> to vector<32x128xi32>
    %42 = arith.cmpi eq, %41, %3 : vector<32x128xi32>
    %43 = arith.extui %42 : vector<32x128xi1> to vector<32x128xi32>
    %44 = arith.addi %39, %43 : vector<32x128xi32>
    %c0_9 = arith.constant 0 : index
    %c0_10 = arith.constant 0 : index
    %c0_11 = arith.constant 0 : index
    %45 = vector.load %arg2[%c0_9, %c0_10, %c0_11] : memref<2x1x32xf32, #tpu.memory_space<vmem>>, vector<1x1x32xf32>
    %46 = vector.shape_cast %45 : vector<1x1x32xf32> to vector<1x32xf32>
    %47 = arith.sitofp %44 : vector<32x128xi32> to vector<32x128xf32>
    %cst_12 = arith.constant dense<0.000000e+00> : vector<1x128xf32>
    %48 = tpu.matmul %46, %47, %cst_12 {dimension_numbers = #tpu.dot_dimension_numbers<[1], [0], [0], [1], [0, 0, 1, 1], [], []>} : vector<1x32xf32>, vector<32x128xf32>, vector<1x128xf32> -> vector<1x128xf32>
    %49 = arith.addf %1, %48 : vector<1x128xf32>
    %c32_i32 = arith.constant 32 : i32
    %50 = vector.broadcast %c32_i32 : i32 to vector<32x128xi32>
    %51 = arith.addi %0, %50 : vector<32x128xi32>
    %c0_i32_13 = arith.constant 0 : i32
    %52 = vector.broadcast %c0_i32_13 : i32 to vector<32x128xi32>
    %c0_14 = arith.constant 0 : index
    %c0_15 = arith.constant 0 : index
    %53 = vector.load %arg1[%c0_14, %c0_15] : memref<8x128xi32, #tpu.memory_space<vmem>>, vector<1x128xi32>
    %54 = vector.broadcast %53 : vector<1x128xi32> to vector<32x128xi32>
    %55 = arith.cmpi eq, %54, %51 : vector<32x128xi32>
    %56 = arith.extui %55 : vector<32x128xi1> to vector<32x128xi32>
    %57 = arith.addi %52, %56 : vector<32x128xi32>
    %c1_16 = arith.constant 1 : index
    %c0_17 = arith.constant 0 : index
    %58 = vector.load %arg1[%c1_16, %c0_17] : memref<8x128xi32, #tpu.memory_space<vmem>>, vector<1x128xi32>
    %59 = vector.broadcast %58 : vector<1x128xi32> to vector<32x128xi32>
    %60 = arith.cmpi eq, %59, %51 : vector<32x128xi32>
    %61 = arith.extui %60 : vector<32x128xi1> to vector<32x128xi32>
    %62 = arith.addi %57, %61 : vector<32x128xi32>
    %c2_18 = arith.constant 2 : index
    %c0_19 = arith.constant 0 : index
    %63 = vector.load %arg1[%c2_18, %c0_19] : memref<8x128xi32, #tpu.memory_space<vmem>>, vector<1x128xi32>
    %64 = vector.broadcast %63 : vector<1x128xi32> to vector<32x128xi32>
    %65 = arith.cmpi eq, %64, %51 : vector<32x128xi32>
    %66 = arith.extui %65 : vector<32x128xi1> to vector<32x128xi32>
    %67 = arith.addi %62, %66 : vector<32x128xi32>
    %c3_20 = arith.constant 3 : index
    %c0_21 = arith.constant 0 : index
    %68 = vector.load %arg1[%c3_20, %c0_21] : memref<8x128xi32, #tpu.memory_space<vmem>>, vector<1x128xi32>
    %69 = vector.broadcast %68 : vector<1x128xi32> to vector<32x128xi32>
    %70 = arith.cmpi eq, %69, %51 : vector<32x128xi32>
    %71 = arith.extui %70 : vector<32x128xi1> to vector<32x128xi32>
    %72 = arith.addi %67, %71 : vector<32x128xi32>
    %c4_22 = arith.constant 4 : index
    %c0_23 = arith.constant 0 : index
    %73 = vector.load %arg1[%c4_22, %c0_23] : memref<8x128xi32, #tpu.memory_space<vmem>>, vector<1x128xi32>
    %74 = vector.broadcast %73 : vector<1x128xi32> to vector<32x128xi32>
    %75 = arith.cmpi eq, %74, %51 : vector<32x128xi32>
    %76 = arith.extui %75 : vector<32x128xi1> to vector<32x128xi32>
    %77 = arith.addi %72, %76 : vector<32x128xi32>
    %c5_24 = arith.constant 5 : index
    %c0_25 = arith.constant 0 : index
    %78 = vector.load %arg1[%c5_24, %c0_25] : memref<8x128xi32, #tpu.memory_space<vmem>>, vector<1x128xi32>
    %79 = vector.broadcast %78 : vector<1x128xi32> to vector<32x128xi32>
    %80 = arith.cmpi eq, %79, %51 : vector<32x128xi32>
    %81 = arith.extui %80 : vector<32x128xi1> to vector<32x128xi32>
    %82 = arith.addi %77, %81 : vector<32x128xi32>
    %c6_26 = arith.constant 6 : index
    %c0_27 = arith.constant 0 : index
    %83 = vector.load %arg1[%c6_26, %c0_27] : memref<8x128xi32, #tpu.memory_space<vmem>>, vector<1x128xi32>
    %84 = vector.broadcast %83 : vector<1x128xi32> to vector<32x128xi32>
    %85 = arith.cmpi eq, %84, %51 : vector<32x128xi32>
    %86 = arith.extui %85 : vector<32x128xi1> to vector<32x128xi32>
    %87 = arith.addi %82, %86 : vector<32x128xi32>
    %c7_28 = arith.constant 7 : index
    %c0_29 = arith.constant 0 : index
    %88 = vector.load %arg1[%c7_28, %c0_29] : memref<8x128xi32, #tpu.memory_space<vmem>>, vector<1x128xi32>
    %89 = vector.broadcast %88 : vector<1x128xi32> to vector<32x128xi32>
    %90 = arith.cmpi eq, %89, %51 : vector<32x128xi32>
    %91 = arith.extui %90 : vector<32x128xi1> to vector<32x128xi32>
    %92 = arith.addi %87, %91 : vector<32x128xi32>
    %c1_30 = arith.constant 1 : index
    %c0_31 = arith.constant 0 : index
    %c0_32 = arith.constant 0 : index
    %93 = vector.load %arg2[%c1_30, %c0_31, %c0_32] : memref<2x1x32xf32, #tpu.memory_space<vmem>>, vector<1x1x32xf32>
    %94 = vector.shape_cast %93 : vector<1x1x32xf32> to vector<1x32xf32>
    %95 = arith.sitofp %92 : vector<32x128xi32> to vector<32x128xf32>
    %cst_33 = arith.constant dense<0.000000e+00> : vector<1x128xf32>
    %96 = tpu.matmul %94, %95, %cst_33 {dimension_numbers = #tpu.dot_dimension_numbers<[1], [0], [0], [1], [0, 0, 1, 1], [], []>} : vector<1x32xf32>, vector<32x128xf32>, vector<1x128xf32> -> vector<1x128xf32>
    %97 = arith.addf %49, %96 : vector<1x128xf32>
    %c0_34 = arith.constant 0 : index
    %c0_35 = arith.constant 0 : index
    %98 = vector.load %arg3[%c0_34, %c0_35] : memref<1x1xf32, #tpu.memory_space<vmem>>, vector<1x1xf32>
    %99 = vector.broadcast %98 : vector<1x1xf32> to vector<1x128xf32>
    %100 = arith.addf %97, %99 : vector<1x128xf32>
    %c0_36 = arith.constant 0 : index
    %c0_37 = arith.constant 0 : index
    %101 = vector.load %arg4[%c0_36, %c0_37] : memref<1x128xf32, #tpu.memory_space<vmem>>, vector<1x128xf32>
    tpu.vector_store %arg4[%c0_36, %c0_37], %100 {strides = array<i32>} : memref<1x128xf32, #tpu.memory_space<vmem>>, vector<1x128xf32>,
    return
  }
  func.func @transform_0(%arg0: i32) -> (i32, i32) {
    %c0_i32 = arith.constant 0 : i32
    %c0_i32_0 = arith.constant 0 : i32
    return %c0_i32, %arg0 : i32, i32
  }
  func.func @transform_1(%arg0: i32) -> (i32, i32, i32) {
    %c0_i32 = arith.constant 0 : i32
    %c0_i32_0 = arith.constant 0 : i32
    %c0_i32_1 = arith.constant 0 : i32
    %c0_i32_2 = arith.constant 0 : i32
    return %c0_i32, %c0_i32_0, %c0_i32_1 : i32, i32, i32
  }
  func.func @transform_2(%arg0: i32) -> (i32, i32) {
    %c0_i32 = arith.constant 0 : i32
    %c0_i32_0 = arith.constant 0 : i32
    %c0_i32_1 = arith.constant 0 : i32
    return %c0_i32, %c0_i32_0 : i32, i32
  }
  func.func @transform_3(%arg0: i32) -> (i32, i32) {
    %c0_i32 = arith.constant 0 : i32
    %c0_i32_0 = arith.constant 0 : i32
    return %c0_i32, %arg0 : i32, i32
  }
}

module attributes {stable_mosaic.version = 11 : i64} {
  func.func @linear_kernel(%arg0: i32, %arg1: memref<8x128xi32, #tpu.memory_space<vmem>>, %arg2: memref<2x1x32xf32, #tpu.memory_space<vmem>>, %arg3: memref<1x1xf32, #tpu.memory_space<vmem>>, %arg4: memref<1x128xf32, #tpu.memory_space<vmem>>) attributes {dimension_semantics = [#tpu.dimension_semantics<parallel>], iteration_bounds = array<i64: 1>, scalar_prefetch = 0 : i64, scratch_operands = 0 : i64, tpu.core_type = #tpu.core_type<tc>, window_params = [{transform_indices = @transform_0, window_bounds = array<i64: 8, 128>}, {pipeline_mode = #tpu.pipeline_mode<synchronous>, transform_indices = @transform_1, window_bounds = array<i64: 2, 1, 32>}, {pipeline_mode = #tpu.pipeline_mode<synchronous>, transform_indices = @transform_2, window_bounds = array<i64: 1, 1>}, {transform_indices = @transform_3, window_bounds = array<i64: 1, 128>}]} {
    %0 = tpu.iota {dimensions = array<i32: 0>} : vector<32x128xi32>
    %cst = arith.constant 0.000000e+00 : f32
    %1 = vector.broadcast %cst : f32 to vector<1x128xf32>
    %c0_i32 = arith.constant 0 : i32
    %2 = vector.broadcast %c0_i32 : i32 to vector<32x128xi32>
    %3 = arith.addi %0, %2 : vector<32x128xi32>
    %c0_i32_0 = arith.constant 0 : i32
    %4 = vector.broadcast %c0_i32_0 : i32 to vector<32x128xi32>
    %c0 = arith.constant 0 : index
    %c0_1 = arith.constant 0 : index
    %5 = vector.load %arg1[%c0, %c0_1] : memref<8x128xi32, #tpu.memory_space<vmem>>, vector<1x128xi32>
    %6 = vector.broadcast %5 : vector<1x128xi32> to vector<32x128xi32>
    %7 = arith.cmpi eq, %6, %3 : vector<32x128xi32>
    %8 = arith.extui %7 : vector<32x128xi1> to vector<32x128xi32>
    %9 = arith.addi %4, %8 : vector<32x128xi32>
    %c1 = arith.constant 1 : index
    %c0_2 = arith.constant 0 : index
    %10 = vector.load %arg1[%c1, %c0_2] : memref<8x128xi32, #tpu.memory_space<vmem>>, vector<1x128xi32>
    %11 = vector.broadcast %10 : vector<1x128xi32> to vector<32x128xi32>
    %12 = arith.cmpi eq, %11, %3 : vector<32x128xi32>
    %13 = arith.extui %12 : vector<32x128xi1> to vector<32x128xi32>
    %14 = arith.addi %9, %13 : vector<32x128xi32>
    %c2 = arith.constant 2 : index
    %c0_3 = arith.constant 0 : index
    %15 = vector.load %arg1[%c2, %c0_3] : memref<8x128xi32, #tpu.memory_space<vmem>>, vector<1x128xi32>
    %16 = vector.broadcast %15 : vector<1x128xi32> to vector<32x128xi32>
    %17 = arith.cmpi eq, %16, %3 : vector<32x128xi32>
    %18 = arith.extui %17 : vector<32x128xi1> to vector<32x128xi32>
    %19 = arith.addi %14, %18 : vector<32x128xi32>
    %c3 = arith.constant 3 : index
    %c0_4 = arith.constant 0 : index
    %20 = vector.load %arg1[%c3, %c0_4] : memref<8x128xi32, #tpu.memory_space<vmem>>, vector<1x128xi32>
    %21 = vector.broadcast %20 : vector<1x128xi32> to vector<32x128xi32>
    %22 = arith.cmpi eq, %21, %3 : vector<32x128xi32>
    %23 = arith.extui %22 : vector<32x128xi1> to vector<32x128xi32>
    %24 = arith.addi %19, %23 : vector<32x128xi32>
    %c4 = arith.constant 4 : index
    %c0_5 = arith.constant 0 : index
    %25 = vector.load %arg1[%c4, %c0_5] : memref<8x128xi32, #tpu.memory_space<vmem>>, vector<1x128xi32>
    %26 = vector.broadcast %25 : vector<1x128xi32> to vector<32x128xi32>
    %27 = arith.cmpi eq, %26, %3 : vector<32x128xi32>
    %28 = arith.extui %27 : vector<32x128xi1> to vector<32x128xi32>
    %29 = arith.addi %24, %28 : vector<32x128xi32>
    %c5 = arith.constant 5 : index
    %c0_6 = arith.constant 0 : index
    %30 = vector.load %arg1[%c5, %c0_6] : memref<8x128xi32, #tpu.memory_space<vmem>>, vector<1x128xi32>
    %31 = vector.broadcast %30 : vector<1x128xi32> to vector<32x128xi32>
    %32 = arith.cmpi eq, %31, %3 : vector<32x128xi32>
    %33 = arith.extui %32 : vector<32x128xi1> to vector<32x128xi32>
    %34 = arith.addi %29, %33 : vector<32x128xi32>
    %c6 = arith.constant 6 : index
    %c0_7 = arith.constant 0 : index
    %35 = vector.load %arg1[%c6, %c0_7] : memref<8x128xi32, #tpu.memory_space<vmem>>, vector<1x128xi32>
    %36 = vector.broadcast %35 : vector<1x128xi32> to vector<32x128xi32>
    %37 = arith.cmpi eq, %36, %3 : vector<32x128xi32>
    %38 = arith.extui %37 : vector<32x128xi1> to vector<32x128xi32>
    %39 = arith.addi %34, %38 : vector<32x128xi32>
    %c7 = arith.constant 7 : index
    %c0_8 = arith.constant 0 : index
    %40 = vector.load %arg1[%c7, %c0_8] : memref<8x128xi32, #tpu.memory_space<vmem>>, vector<1x128xi32>
    %41 = vector.broadcast %40 : vector<1x128xi32> to vector<32x128xi32>
    %42 = arith.cmpi eq, %41, %3 : vector<32x128xi32>
    %43 = arith.extui %42 : vector<32x128xi1> to vector<32x128xi32>
    %44 = arith.addi %39, %43 : vector<32x128xi32>
    %c0_9 = arith.constant 0 : index
    %c0_10 = arith.constant 0 : index
    %c0_11 = arith.constant 0 : index
    %45 = vector.load %arg2[%c0_9, %c0_10, %c0_11] : memref<2x1x32xf32, #tpu.memory_space<vmem>>, vector<1x1x32xf32>
    %46 = vector.shape_cast %45 : vector<1x1x32xf32> to vector<1x32xf32>
    %47 = arith.sitofp %44 : vector<32x128xi32> to vector<32x128xf32>
    %cst_12 = arith.constant dense<0.000000e+00> : vector<1x128xf32>
    %48 = tpu.matmul %46, %47, %cst_12 {dimension_numbers = #tpu.dot_dimension_numbers<[1], [0], [0], [1], [0, 0, 1, 1], [], []>} : vector<1x32xf32>, vector<32x128xf32>, vector<1x128xf32> -> vector<1x128xf32>
    %49 = arith.addf %1, %48 : vector<1x128xf32>
    %c32_i32 = arith.constant 32 : i32
    %50 = vector.broadcast %c32_i32 : i32 to vector<32x128xi32>
    %51 = arith.addi %0, %50 : vector<32x128xi32>
    %c0_i32_13 = arith.constant 0 : i32
    %52 = vector.broadcast %c0_i32_13 : i32 to vector<32x128xi32>
    %c0_14 = arith.constant 0 : index
    %c0_15 = arith.constant 0 : index
    %53 = vector.load %arg1[%c0_14, %c0_15] : memref<8x128xi32, #tpu.memory_space<vmem>>, vector<1x128xi32>
    %54 = vector.broadcast %53 : vector<1x128xi32> to vector<32x128xi32>
    %55 = arith.cmpi eq, %54, %51 : vector<32x128xi32>
    %56 = arith.extui %55 : vector<32x128xi1> to vector<32x128xi32>
    %57 = arith.addi %52, %56 : vector<32x128xi32>
    %c1_16 = arith.constant 1 : index
    %c0_17 = arith.constant 0 : index
    %58 = vector.load %arg1[%c1_16, %c0_17] : memref<8x128xi32, #tpu.memory_space<vmem>>, vector<1x128xi32>
    %59 = vector.broadcast %58 : vector<1x128xi32> to vector<32x128xi32>
    %60 = arith.cmpi eq, %59, %51 : vector<32x128xi32>
    %61 = arith.extui %60 : vector<32x128xi1> to vector<32x128xi32>
    %62 = arith.addi %57, %61 : vector<32x128xi32>
    %c2_18 = arith.constant 2 : index
    %c0_19 = arith.constant 0 : index
    %63 = vector.load %arg1[%c2_18, %c0_19] : memref<8x128xi32, #tpu.memory_space<vmem>>, vector<1x128xi32>
    %64 = vector.broadcast %63 : vector<1x128xi32> to vector<32x128xi32>
    %65 = arith.cmpi eq, %64, %51 : vector<32x128xi32>
    %66 = arith.extui %65 : vector<32x128xi1> to vector<32x128xi32>
    %67 = arith.addi %62, %66 : vector<32x128xi32>
    %c3_20 = arith.constant 3 : index
    %c0_21 = arith.constant 0 : index
    %68 = vector.load %arg1[%c3_20, %c0_21] : memref<8x128xi32, #tpu.memory_space<vmem>>, vector<1x128xi32>
    %69 = vector.broadcast %68 : vector<1x128xi32> to vector<32x128xi32>
    %70 = arith.cmpi eq, %69, %51 : vector<32x128xi32>
    %71 = arith.extui %70 : vector<32x128xi1> to vector<32x128xi32>
    %72 = arith.addi %67, %71 : vector<32x128xi32>
    %c4_22 = arith.constant 4 : index
    %c0_23 = arith.constant 0 : index
    %73 = vector.load %arg1[%c4_22, %c0_23] : memref<8x128xi32, #tpu.memory_space<vmem>>, vector<1x128xi32>
    %74 = vector.broadcast %73 : vector<1x128xi32> to vector<32x128xi32>
    %75 = arith.cmpi eq, %74, %51 : vector<32x128xi32>
    %76 = arith.extui %75 : vector<32x128xi1> to vector<32x128xi32>
    %77 = arith.addi %72, %76 : vector<32x128xi32>
    %c5_24 = arith.constant 5 : index
    %c0_25 = arith.constant 0 : index
    %78 = vector.load %arg1[%c5_24, %c0_25] : memref<8x128xi32, #tpu.memory_space<vmem>>, vector<1x128xi32>
    %79 = vector.broadcast %78 : vector<1x128xi32> to vector<32x128xi32>
    %80 = arith.cmpi eq, %79, %51 : vector<32x128xi32>
    %81 = arith.extui %80 : vector<32x128xi1> to vector<32x128xi32>
    %82 = arith.addi %77, %81 : vector<32x128xi32>
    %c6_26 = arith.constant 6 : index
    %c0_27 = arith.constant 0 : index
    %83 = vector.load %arg1[%c6_26, %c0_27] : memref<8x128xi32, #tpu.memory_space<vmem>>, vector<1x128xi32>
    %84 = vector.broadcast %83 : vector<1x128xi32> to vector<32x128xi32>
    %85 = arith.cmpi eq, %84, %51 : vector<32x128xi32>
    %86 = arith.extui %85 : vector<32x128xi1> to vector<32x128xi32>
    %87 = arith.addi %82, %86 : vector<32x128xi32>
    %c7_28 = arith.constant 7 : index
    %c0_29 = arith.constant 0 : index
    %88 = vector.load %arg1[%c7_28, %c0_29] : memref<8x128xi32, #tpu.memory_space<vmem>>, vector<1x128xi32>
    %89 = vector.broadcast %88 : vector<1x128xi32> to vector<32x128xi32>
    %90 = arith.cmpi eq, %89, %51 : vector<32x128xi32>
    %91 = arith.extui %90 : vector<32x128xi1> to vector<32x128xi32>
    %92 = arith.addi %87, %91 : vector<32x128xi32>
    %c1_30 = arith.constant 1 : index
    %c0_31 = arith.constant 0 : index
    %c0_32 = arith.constant 0 : index
    %93 = vector.load %arg2[%c1_30, %c0_31, %c0_32] : memref<2x1x32xf32, #tpu.memory_space<vmem>>, vector<1x1x32xf32>
    %94 = vector.shape_cast %93 : vector<1x1x32xf32> to vector<1x32xf32>
    %95 = arith.sitofp %92 : vector<32x128xi32> to vector<32x128xf32>
    %cst_33 = arith.constant dense<0.000000e+00> : vector<1x128xf32>
    %96 = tpu.matmul %94, %95, %cst_33 {dimension_numbers = #tpu.dot_dimension_numbers<[1], [0], [0], [1], [0, 0, 1, 1], [], []>} : vector<1x32xf32>, vector<32x128xf32>, vector<1x128xf32> -> vector<1x128xf32>
    %97 = arith.addf %49, %96 : vector<1x128xf32>
    %c0_34 = arith.constant 0 : index
    %c0_35 = arith.constant 0 : index
    %98 = vector.load %arg3[%c0_34, %c0_35] : memref<1x1xf32, #tpu.memory_space<vmem>>, vector<1x1xf32>
    %99 = vector.broadcast %98 : vector<1x1xf32> to vector<1x128xf32>
    %100 = arith.addf %97, %99 : vector<1x128xf32>
    %c0_36 = arith.constant 0 : index
    %c0_37 = arith.constant 0 : index
    %101 = vector.load %arg4[%c0_36, %c0_37] : memref<1x128xf32, #tpu.memory_space<vmem>>, vector<1x128xf32>
    tpu.vector_store %arg4[%c0_36, %c0_37], %100 {strides = array<i32>} : memref<1x128xf32, #tpu.memory_space<vmem>>, vector<1x128xf32>,
    return
  }
  func.func @transform_0(%arg0: i32) -> (i32, i32) {
    %c0_i32 = arith.constant 0 : i32
    %c0_i32_0 = arith.constant 0 : i32
    return %c0_i32, %arg0 : i32, i32
  }
  func.func @transform_1(%arg0: i32) -> (i32, i32, i32) {
    %c0_i32 = arith.constant 0 : i32
    %c0_i32_0 = arith.constant 0 : i32
    %c0_i32_1 = arith.constant 0 : i32
    %c0_i32_2 = arith.constant 0 : i32
    return %c0_i32, %c0_i32_0, %c0_i32_1 : i32, i32, i32
  }
  func.func @transform_2(%arg0: i32) -> (i32, i32) {
    %c0_i32 = arith.constant 0 : i32
    %c0_i32_0 = arith.constant 0 : i32
    %c0_i32_1 = arith.constant 0 : i32
    return %c0_i32, %c0_i32_0 : i32, i32
  }
  func.func @transform_3(%arg0: i32) -> (i32, i32) {
    %c0_i32 = arith.constant 0 : i32
    %c0_i32_0 = arith.constant 0 : i32
    return %c0_i32, %arg0 : i32, i32
  }
}

</mosaic_0001>

<llo_original>
// kernel: tpu_custom_call.1
$region0: #{tpu_custom_call.1}
  #allocation0 [shape = 'u32[]', space=smem, size = 0x4, offset = 0x4, fixed_abs, tag = 'smem constant byte address 0x4 - core index']
  #allocation1 [shape = 'u32[144,128]{1,0:T(1,128)}', space=vmem, size = 0x12000, scoped, tag = 'internal scratch']
  #allocation2 [shape = 'f32[1,1]{1,0:T(1,128)S(1)}', space=vmem, size = 0x200, scoped, tag = 'scoped memory for tpu_custom_call.1']
  %s0 = inlined_call_operand.hbm [shape: s32[8,128], index: 0, kind: input, shape index: {}]
  %s1 = inlined_call_operand.vmem [shape: f32[2,1,32], index: 1, kind: input, shape index: {}]
  %s2 = inlined_call_operand.<no memory space> [shape: f32[1,1], index: 2, kind: input, shape index: {}]
  %s3 = inlined_call_operand.hbm [shape: f32[1,128], index: 3, kind: output, shape index: {}]
  %s4 = sld [smem:[#allocation0]]
  $region26: #{tpu_custom_call.1} parent=0
    _
  %s6 = ssub.s32 1, %s4
  %s7 = scalar_select 0, %s6, %s4
  %v8 = vstv %s2
  %9 = vst [vmem:[#allocation2] sm:$0x1] %v8
  $region1: #{tpu_custom_call.1} parent=0
    #allocation3 [shape = 'u8[4096]{0}', space=vmem, size = 0x1000, scoped, tag = 'input window, operand 0, single buffered']
    #allocation4 [shape = 's32[1]{0}', space=sflag, size = 0x4, scoped, tag = 'scoped memory for tpu_custom_call.1']
    #allocation5 [shape = 's32[1]{0}', space=sflag, size = 0x4, scoped, tag = 'scoped memory for tpu_custom_call.1']
    #allocation6 [shape = 'u8[512]{0}', space=vmem, size = 0x400, scoped, tag = 'output window, operand 0, single buffered']
    %10 = vsyncpa [#allocation4], 0
    %11 = vsyncpa [#allocation5], 0
    // Predicated region
    $region2: #{tpu_custom_call.1} parent=1 // pred_check
      _
    $region3: #{tpu_custom_call.1} parent=1 // pred_check_branch
      %13 = sbr.rel (0) target = $region5
    $region4: #{tpu_custom_call.1} parent=1 // pred_region
      %s15 = ssub.s32 128, 128
      %16 = vsyncadd [#allocation4], %s15
      %s18 = sshll.u32 [#allocation3], 4
      %s19 = int_to_ptr.vmem [resolvable:$true] %s18
      %21 = dma.hbm_to_vmem [thread:$0]  %s0, 128, %s19, [#allocation4]
    $region5: #{tpu_custom_call.1} parent=1 // pred_fallthru
      _
    // Predicated region
    $region6: #{tpu_custom_call.1} parent=1 // pred_check
      _
    $region7: #{tpu_custom_call.1} parent=1 // pred_check_branch
      %23 = sbr.rel (0) target = $region9
    $region8: #{tpu_custom_call.1} parent=1 // pred_region
      _
    $region9: #{tpu_custom_call.1} parent=1 // pred_fallthru
      _
    // Predicated region
    $region10: #{tpu_custom_call.1} parent=1 // pred_check
      _
    $region11: #{tpu_custom_call.1} parent=1 // pred_check_branch
      %25 = sbr.rel (0) target = $region13
    $region12: #{tpu_custom_call.1} parent=1 // pred_region
      _
    $region13: #{tpu_custom_call.1} parent=1 // pred_fallthru
      _
    // Predicated region
    $region14: #{tpu_custom_call.1} parent=1 // pred_check
      _
    $region15: #{tpu_custom_call.1} parent=1 // pred_check_branch
      %27 = sbr.rel (0) target = $region17
    $region16: #{tpu_custom_call.1} parent=1 // pred_region
      %28 = dma.done [#allocation4], 128
    $region17: #{tpu_custom_call.1} parent=1 // pred_fallthru
      _
    %v29 = vlaneseq
    %v30 = vshrl.u32 %v29, 7
    %v31 = vadd.s32 %v30, 8
    %v32 = vadd.s32 %v30, 16
    %v33 = vadd.s32 %v30, 24
    %v34 = vld [vmem:[#allocation3] sm:$0x1]
    %v35 = vlaneseq
    %v36 = vshrl.u32 %v35, 7
    %v37 = vsub.s32 0, %v36
    %v38 = vrot.slane %v34, %v37
    %vm39 = vcmp.eq.s32.totalorder %v38, %v30
    %vm40 = vcmp.eq.s32.totalorder %v38, %v31
    %vm41 = vcmp.eq.s32.totalorder %v38, %v32
    %vm42 = vcmp.eq.s32.totalorder %v38, %v33
    %v43 = vsel %vm39, 1, 0
    %v44 = vsel %vm40, 1, 0
    %v45 = vsel %vm41, 1, 0
    %v46 = vsel %vm42, 1, 0
    %v47 = vld [vmem:[#allocation3 + $0x1] sm:$0x1]
    %v48 = vlaneseq
    %v49 = vshrl.u32 %v48, 7
    %v50 = vsub.s32 0, %v49
    %v51 = vrot.slane %v47, %v50
    %vm52 = vcmp.eq.s32.totalorder %v51, %v30
    %vm53 = vcmp.eq.s32.totalorder %v51, %v31
    %vm54 = vcmp.eq.s32.totalorder %v51, %v32
    %vm55 = vcmp.eq.s32.totalorder %v51, %v33
    %v56 = vsel %vm52, 1, 0
    %v57 = vsel %vm53, 1, 0
    %v58 = vsel %vm54, 1, 0
    %v59 = vsel %vm55, 1, 0
    %v60 = vadd.s32 %v43, %v56
    %v61 = vadd.s32 %v44, %v57
    %v62 = vadd.s32 %v45, %v58
    %v63 = vadd.s32 %v46, %v59
    %v64 = vld [vmem:[#allocation3 + $0x2] sm:$0x1]
    %v65 = vlaneseq
    %v66 = vshrl.u32 %v65, 7
    %v67 = vsub.s32 0, %v66
    %v68 = vrot.slane %v64, %v67
    %vm69 = vcmp.eq.s32.totalorder %v68, %v30
    %vm70 = vcmp.eq.s32.totalorder %v68, %v31
    %vm71 = vcmp.eq.s32.totalorder %v68, %v32
    %vm72 = vcmp.eq.s32.totalorder %v68, %v33
    %v73 = vsel %vm69, 1, 0
    %v74 = vsel %vm70, 1, 0
    %v75 = vsel %vm71, 1, 0
    %v76 = vsel %vm72, 1, 0
    %v77 = vadd.s32 %v60, %v73
    %v78 = vadd.s32 %v61, %v74
    %v79 = vadd.s32 %v62, %v75
    %v80 = vadd.s32 %v63, %v76
    %v81 = vld [vmem:[#allocation3 + $0x3] sm:$0x1]
    %v82 = vlaneseq
    %v83 = vshrl.u32 %v82, 7
    %v84 = vsub.s32 0, %v83
    %v85 = vrot.slane %v81, %v84
    %vm86 = vcmp.eq.s32.totalorder %v85, %v30
    %vm87 = vcmp.eq.s32.totalorder %v85, %v31
    %vm88 = vcmp.eq.s32.totalorder %v85, %v32
    %vm89 = vcmp.eq.s32.totalorder %v85, %v33
    %v90 = vsel %vm86, 1, 0
    %v91 = vsel %vm87, 1, 0
    %v92 = vsel %vm88, 1, 0
    %v93 = vsel %vm89, 1, 0
    %v94 = vadd.s32 %v77, %v90
    %v95 = vadd.s32 %v78, %v91
    %v96 = vadd.s32 %v79, %v92
    %v97 = vadd.s32 %v80, %v93
    %v98 = vld [vmem:[#allocation3 + $0x4] sm:$0x1]
    %v99 = vlaneseq
    %v100 = vshrl.u32 %v99, 7
    %v101 = vsub.s32 0, %v100
    %v102 = vrot.slane %v98, %v101
    %vm103 = vcmp.eq.s32.totalorder %v102, %v30
    %vm104 = vcmp.eq.s32.totalorder %v102, %v31
    %vm105 = vcmp.eq.s32.totalorder %v102, %v32
    %vm106 = vcmp.eq.s32.totalorder %v102, %v33
    %v107 = vsel %vm103, 1, 0
    %v108 = vsel %vm104, 1, 0
    %v109 = vsel %vm105, 1, 0
    %v110 = vsel %vm106, 1, 0
    %v111 = vadd.s32 %v94, %v107
    %v112 = vadd.s32 %v95, %v108
    %v113 = vadd.s32 %v96, %v109
    %v114 = vadd.s32 %v97, %v110
    %v115 = vld [vmem:[#allocation3 + $0x5] sm:$0x1]
    %v116 = vlaneseq
    %v117 = vshrl.u32 %v116, 7
    %v118 = vsub.s32 0, %v117
    %v119 = vrot.slane %v115, %v118
    %vm120 = vcmp.eq.s32.totalorder %v119, %v30
    %vm121 = vcmp.eq.s32.totalorder %v119, %v31
    %vm122 = vcmp.eq.s32.totalorder %v119, %v32
    %vm123 = vcmp.eq.s32.totalorder %v119, %v33
    %v124 = vsel %vm120, 1, 0
    %v125 = vsel %vm121, 1, 0
    %v126 = vsel %vm122, 1, 0
    %v127 = vsel %vm123, 1, 0
    %v128 = vadd.s32 %v111, %v124
    %v129 = vadd.s32 %v112, %v125
    %v130 = vadd.s32 %v113, %v126
    %v131 = vadd.s32 %v114, %v127
    %v132 = vld [vmem:[#allocation3 + $0x6] sm:$0x1]
    %v133 = vlaneseq
    %v134 = vshrl.u32 %v133, 7
    %v135 = vsub.s32 0, %v134
    %v136 = vrot.slane %v132, %v135
    %vm137 = vcmp.eq.s32.totalorder %v136, %v30
    %vm138 = vcmp.eq.s32.totalorder %v136, %v31
    %vm139 = vcmp.eq.s32.totalorder %v136, %v32
    %vm140 = vcmp.eq.s32.totalorder %v136, %v33
    %v141 = vsel %vm137, 1, 0
    %v142 = vsel %vm138, 1, 0
    %v143 = vsel %vm139, 1, 0
    %v144 = vsel %vm140, 1, 0
    %v145 = vadd.s32 %v128, %v141
    %v146 = vadd.s32 %v129, %v142
    %v147 = vadd.s32 %v130, %v143
    %v148 = vadd.s32 %v131, %v144
    %v149 = vld [vmem:[#allocation3 + $0x7] sm:$0x1]
    %v150 = vlaneseq
    %v151 = vshrl.u32 %v150, 7
    %v152 = vsub.s32 0, %v151
    %v153 = vrot.slane %v149, %v152
    %vm154 = vcmp.eq.s32.totalorder %v153, %v30
    %vm155 = vcmp.eq.s32.totalorder %v153, %v31
    %vm156 = vcmp.eq.s32.totalorder %v153, %v32
    %vm157 = vcmp.eq.s32.totalorder %v153, %v33
    %v158 = vsel %vm154, 1, 0
    %v159 = vsel %vm155, 1, 0
    %v160 = vsel %vm156, 1, 0
    %v161 = vsel %vm157, 1, 0
    %v162 = vadd.s32 %v145, %v158
    %v163 = vadd.s32 %v146, %v159
    %v164 = vadd.s32 %v147, %v160
    %v165 = vadd.s32 %v148, %v161
    %v166 = vld [vmem:[%s1] sm:$0x1]
    %v167 = vcvt.s32.f32 %v162
    %v168 = vcvt.s32.f32 %v163
    %v169 = vcvt.s32.f32 %v164
    %v170 = vcvt.s32.f32 %v165
    %v171 = vadd.s32 %v30, 32
    %v172 = vadd.s32 %v31, 32
    %v173 = vadd.s32 %v32, 32
    %v174 = vadd.s32 %v33, 32
    %vm175 = vcmp.eq.s32.totalorder %v38, %v171
    %vm176 = vcmp.eq.s32.totalorder %v38, %v172
    %vm177 = vcmp.eq.s32.totalorder %v38, %v173
    %vm178 = vcmp.eq.s32.totalorder %v38, %v174
    %v179 = vsel %vm175, 1, 0
    %v180 = vsel %vm176, 1, 0
    %v181 = vsel %vm177, 1, 0
    %v182 = vsel %vm178, 1, 0
    %vm183 = vcmp.eq.s32.totalorder %v51, %v171
    %vm184 = vcmp.eq.s32.totalorder %v51, %v172
    %vm185 = vcmp.eq.s32.totalorder %v51, %v173
    %vm186 = vcmp.eq.s32.totalorder %v51, %v174
    %v187 = vsel %vm183, 1, 0
    %v188 = vsel %vm184, 1, 0
    %v189 = vsel %vm185, 1, 0
    %v190 = vsel %vm186, 1, 0
    %v191 = vadd.s32 %v179, %v187
    %v192 = vadd.s32 %v180, %v188
    %v193 = vadd.s32 %v181, %v189
    %v194 = vadd.s32 %v182, %v190
    %vm195 = vcmp.eq.s32.totalorder %v68, %v171
    %vm196 = vcmp.eq.s32.totalorder %v68, %v172
    %vm197 = vcmp.eq.s32.totalorder %v68, %v173
    %vm198 = vcmp.eq.s32.totalorder %v68, %v174
    %v199 = vsel %vm195, 1, 0
    %v200 = vsel %vm196, 1, 0
    %v201 = vsel %vm197, 1, 0
    %v202 = vsel %vm198, 1, 0
    %v203 = vadd.s32 %v191, %v199
    %v204 = vadd.s32 %v192, %v200
    %v205 = vadd.s32 %v193, %v201
    %v206 = vadd.s32 %v194, %v202
    %vm207 = vcmp.eq.s32.totalorder %v85, %v171
    %vm208 = vcmp.eq.s32.totalorder %v85, %v172
    %vm209 = vcmp.eq.s32.totalorder %v85, %v173
    %vm210 = vcmp.eq.s32.totalorder %v85, %v174
    %v211 = vsel %vm207, 1, 0
    %v212 = vsel %vm208, 1, 0
    %v213 = vsel %vm209, 1, 0
    %v214 = vsel %vm210, 1, 0
    %v215 = vadd.s32 %v203, %v211
    %v216 = vadd.s32 %v204, %v212
    %v217 = vadd.s32 %v205, %v213
    %v218 = vadd.s32 %v206, %v214
    %vm219 = vcmp.eq.s32.totalorder %v102, %v171
    %vm220 = vcmp.eq.s32.totalorder %v102, %v172
    %vm221 = vcmp.eq.s32.totalorder %v102, %v173
    %vm222 = vcmp.eq.s32.totalorder %v102, %v174
    %v223 = vsel %vm219, 1, 0
    %v224 = vsel %vm220, 1, 0
    %v225 = vsel %vm221, 1, 0
    %v226 = vsel %vm222, 1, 0
    %v227 = vadd.s32 %v215, %v223
    %v228 = vadd.s32 %v216, %v224
    %v229 = vadd.s32 %v217, %v225
    %v230 = vadd.s32 %v218, %v226
    %vm231 = vcmp.eq.s32.totalorder %v119, %v171
    %vm232 = vcmp.eq.s32.totalorder %v119, %v172
    %vm233 = vcmp.eq.s32.totalorder %v119, %v173
    %vm234 = vcmp.eq.s32.totalorder %v119, %v174
    %v235 = vsel %vm231, 1, 0
    %v236 = vsel %vm232, 1, 0
    %v237 = vsel %vm233, 1, 0
    %v238 = vsel %vm234, 1, 0
    %v239 = vadd.s32 %v227, %v235
    %v240 = vadd.s32 %v228, %v236
    %v241 = vadd.s32 %v229, %v237
    %v242 = vadd.s32 %v230, %v238
    %vm243 = vcmp.eq.s32.totalorder %v136, %v171
    %vm244 = vcmp.eq.s32.totalorder %v136, %v172
    %vm245 = vcmp.eq.s32.totalorder %v136, %v173
    %vm246 = vcmp.eq.s32.totalorder %v136, %v174
    %v247 = vsel %vm243, 1, 0
    %v248 = vsel %vm244, 1, 0
    %v249 = vsel %vm245, 1, 0
    %v250 = vsel %vm246, 1, 0
    %v251 = vadd.s32 %v239, %v247
    %v252 = vadd.s32 %v240, %v248
    %v253 = vadd.s32 %v241, %v249
    %v254 = vadd.s32 %v242, %v250
    %vm255 = vcmp.eq.s32.totalorder %v153, %v171
    %vm256 = vcmp.eq.s32.totalorder %v153, %v172
    %vm257 = vcmp.eq.s32.totalorder %v153, %v173
    %vm258 = vcmp.eq.s32.totalorder %v153, %v174
    %v259 = vsel %vm255, 1, 0
    %v260 = vsel %vm256, 1, 0
    %v261 = vsel %vm257, 1, 0
    %v262 = vsel %vm258, 1, 0
    %v263 = vadd.s32 %v251, %v259
    %v264 = vadd.s32 %v252, %v260
    %v265 = vadd.s32 %v253, %v261
    %v266 = vadd.s32 %v254, %v262
    %s267 = scalar_lea.vmem %s1, 1
    %v268 = vld [vmem:[%s267] sm:$0x1]
    %v269 = vcvt.s32.f32 %v263
    %v270 = vcvt.s32.f32 %v264
    %v271 = vcvt.s32.f32 %v265
    %v272 = vcvt.s32.f32 %v266
    %vm273 = vcmask 261120
    %v275 = vsel %vm273, %v268, 0
    %277 = vmatprep.subr.mxu0 0.0
    %278 = vmatpush1.msra.mxu0 %v269
    %279 = vmatprep.subr.mxu0 0.0
    %280 = vmatpush1.msra.mxu0 %v270
    %281 = vmatprep.subr.mxu0 0.0
    %282 = vmatpush1.msra.mxu0 %v271
    %283 = vmatprep.subr.mxu0 0.0
    %284 = vmatpush1.msra.mxu0 %v272
    %285 = vmatprep.subr.mxu0 0.0
    %286 = vmatpush1.msra.mxu0 0.0
    %287 = vmatprep.subr.mxu0 0.0
    %288 = vmatpush1.msra.mxu0 0.0
    %289 = vmatprep.subr.mxu0 0.0
    %290 = vmatpush1.msra.mxu0 0.0
    %291 = vmatprep.subr.mxu0 0.0
    %292 = vmatpush1.msra.mxu0 0.0
    %293 = vmatprep.subr.mxu0 0.0
    %294 = vmatpush1.msra.mxu0 0.0
    %295 = vmatprep.subr.mxu0 0.0
    %296 = vmatpush1.msra.mxu0 0.0
    %297 = vmatprep.subr.mxu0 0.0
    %298 = vmatpush1.msra.mxu0 0.0
    %299 = vmatprep.subr.mxu0 0.0
    %300 = vmatpush1.msra.mxu0 0.0
    %301 = vmatprep.subr.mxu0 0.0
    %302 = vmatpush1.msra.mxu0 0.0
    %303 = vmatprep.subr.mxu0 0.0
    %304 = vmatpush1.msra.mxu0 0.0
    %305 = vmatprep.subr.mxu0 0.0
    %306 = vmatpush1.msra.mxu0 0.0
    %307 = vmatprep.subr.mxu0 0.0
    %308 = vmatpush1.msra.mxu0 0.0
    %309 = vmatprep.subr.mxu0 0.0
    %310 = vmatpush1.msra.mxu0 0.0
    %311 = vmatprep.subr.mxu0 0.0
    %312 = vmatpush1.msra.mxu0 0.0
    %313 = vmatprep.subr.mxu0 0.0
    %314 = vmatpush1.msra.mxu0 0.0
    %315 = vmatprep.subr.mxu0 0.0
    %316 = vmatpush1.msra.mxu0 0.0
    %317 = vmatprep.subr.mxu0 0.0
    %318 = vmatpush1.msra.mxu0 0.0
    %319 = vmatprep.subr.mxu0 0.0
    %320 = vmatpush1.msra.mxu0 0.0
    %321 = vmatprep.subr.mxu0 0.0
    %322 = vmatpush1.msra.mxu0 0.0
    %323 = vmatprep.subr.mxu0 0.0
    %324 = vmatpush1.msra.mxu0 0.0
    %325 = vmatprep.subr.mxu0 0.0
    %326 = vmatpush1.msra.mxu0 0.0
    %327 = vmatprep.subr.mxu0 0.0
    %328 = vmatpush1.msra.mxu0 0.0
    %329 = vmatprep.subr.mxu0 0.0
    %330 = vmatpush1.msra.mxu0 0.0
    %331 = vmatprep.subr.mxu0 0.0
    %332 = vmatpush1.msra.mxu0 0.0
    %333 = vmatprep.subr.mxu0 0.0
    %334 = vmatpush1.msra.mxu0 0.0
    %335 = vmatprep.subr.mxu0 0.0
    %336 = vmatpush1.msra.mxu0 0.0
    %337 = vmatprep.subr.mxu0 0.0
    %338 = vmatpush1.msra.mxu0 0.0
    %339 = vmatprep.subr.mxu0 0.0
    %340 = vmatpush1.msra.mxu0 0.0
    %341 = vmatprep.mubr.f32.mxu0 0.0
    %342 = vmatmul.mubr.f32.gmra.mrb[0].mxu0 %v275
    %v343 = vpop.f32.mrb[0].mxu0
    %v344 = vadd.f32 0.0, %v343
    %v345 = vpop.f32.mrb[0].mxu0
    %346 = vdwg.mxu0
    %v348 = vsel %vm273, %v166, 0
    %350 = vmatprep.subr.mxu0 0.0
    %351 = vmatpush1.msra.mxu0 %v167
    %352 = vmatprep.subr.mxu0 0.0
    %353 = vmatpush1.msra.mxu0 %v168
    %354 = vmatprep.subr.mxu0 0.0
    %355 = vmatpush1.msra.mxu0 %v169
    %356 = vmatprep.subr.mxu0 0.0
    %357 = vmatpush1.msra.mxu0 %v170
    %358 = vmatprep.subr.mxu0 0.0
    %359 = vmatpush1.msra.mxu0 0.0
    %360 = vmatprep.subr.mxu0 0.0
    %361 = vmatpush1.msra.mxu0 0.0
    %362 = vmatprep.subr.mxu0 0.0
    %363 = vmatpush1.msra.mxu0 0.0
    %364 = vmatprep.subr.mxu0 0.0
    %365 = vmatpush1.msra.mxu0 0.0
    %366 = vmatprep.subr.mxu0 0.0
    %367 = vmatpush1.msra.mxu0 0.0
    %368 = vmatprep.subr.mxu0 0.0
    %369 = vmatpush1.msra.mxu0 0.0
    %370 = vmatprep.subr.mxu0 0.0
    %371 = vmatpush1.msra.mxu0 0.0
    %372 = vmatprep.subr.mxu0 0.0
    %373 = vmatpush1.msra.mxu0 0.0
    %374 = vmatprep.subr.mxu0 0.0
    %375 = vmatpush1.msra.mxu0 0.0
    %376 = vmatprep.subr.mxu0 0.0
    %377 = vmatpush1.msra.mxu0 0.0
    %378 = vmatprep.subr.mxu0 0.0
    %379 = vmatpush1.msra.mxu0 0.0
    %380 = vmatprep.subr.mxu0 0.0
    %381 = vmatpush1.msra.mxu0 0.0
    %382 = vmatprep.subr.mxu0 0.0
    %383 = vmatpush1.msra.mxu0 0.0
    %384 = vmatprep.subr.mxu0 0.0
    %385 = vmatpush1.msra.mxu0 0.0
    %386 = vmatprep.subr.mxu0 0.0
    %387 = vmatpush1.msra.mxu0 0.0
    %388 = vmatprep.subr.mxu0 0.0
    %389 = vmatpush1.msra.mxu0 0.0
    %390 = vmatprep.subr.mxu0 0.0
    %391 = vmatpush1.msra.mxu0 0.0
    %392 = vmatprep.subr.mxu0 0.0
    %393 = vmatpush1.msra.mxu0 0.0
    %394 = vmatprep.subr.mxu0 0.0
    %395 = vmatpush1.msra.mxu0 0.0
    %396 = vmatprep.subr.mxu0 0.0
    %397 = vmatpush1.msra.mxu0 0.0
    %398 = vmatprep.subr.mxu0 0.0
    %399 = vmatpush1.msra.mxu0 0.0
    %400 = vmatprep.subr.mxu0 0.0
    %401 = vmatpush1.msra.mxu0 0.0
    %402 = vmatprep.subr.mxu0 0.0
    %403 = vmatpush1.msra.mxu0 0.0
    %404 = vmatprep.subr.mxu0 0.0
    %405 = vmatpush1.msra.mxu0 0.0
    %406 = vmatprep.subr.mxu0 0.0
    %407 = vmatpush1.msra.mxu0 0.0
    %408 = vmatprep.subr.mxu0 0.0
    %409 = vmatpush1.msra.mxu0 0.0
    %410 = vmatprep.subr.mxu0 0.0
    %411 = vmatpush1.msra.mxu0 0.0
    %412 = vmatprep.subr.mxu0 0.0
    %413 = vmatpush1.msra.mxu0 0.0
    %414 = vmatprep.mubr.f32.mxu0 0.0
    %415 = vmatmul.mubr.f32.gmra.mrb[0].mxu0 %v348
    %v416 = vpop.f32.mrb[0].mxu0
    %v417 = vadd.f32 %v344, %v416
    %v418 = vpop.f32.mrb[0].mxu0
    %419 = vdwg.mxu0
    %v420 = vld [vmem:[#allocation2] sm:$0x1]
    %422 = vset.pattern.permute.xlu0 0
    %423 = vperm.xlu0 %422, %v420
    %v424 = vpop.permute.xlu0 %423
    %v426 = vlaneseq
    %v427 = vshrl.u32 %v426, 7
    %v428 = vsub.s32 0, %v427
    %v429 = vrot.slane %v424, %v428
    %v430 = vadd.f32 %v417, %v429
    %431 = vst [vmem:[#allocation6] sm:$0x1] %v430
    // Predicated region
    $region18: #{tpu_custom_call.1} parent=1 // pred_check
      _
    $region19: #{tpu_custom_call.1} parent=1 // pred_check_branch
      %433 = sbr.rel (0) target = $region21
    $region20: #{tpu_custom_call.1} parent=1 // pred_region
      %s435 = ssub.s32 16, 16
      %436 = vsyncadd [#allocation5], %s435
      %s438 = sshll.u32 [#allocation6], 4
      %s439 = int_to_ptr.vmem [resolvable:$true] %s438
      %441 = dma.vmem_to_hbm [thread:$0]  %s439, 16, %s3, [#allocation5]
    $region21: #{tpu_custom_call.1} parent=1 // pred_fallthru
      _
    // Predicated region
    $region22: #{tpu_custom_call.1} parent=1 // pred_check
      _
    $region23: #{tpu_custom_call.1} parent=1 // pred_check_branch
      %443 = sbr.rel (0) target = $region25
    $region24: #{tpu_custom_call.1} parent=1 // pred_region
      %444 = dma.done [#allocation5], 16
    $region25: #{tpu_custom_call.1} parent=1 // pred_fallthru
      _
    %445 = vsyncpa [#allocation4], 1
    %446 = vsyncpa [#allocation5], 1

// kernel: tpu_custom_call.1
$region0: #{tpu_custom_call.1}
  #allocation0 [shape = 'u32[]', space=smem, size = 0x4, offset = 0x4, fixed_abs, tag = 'smem constant byte address 0x4 - core index']
  #allocation1 [shape = 'u32[144,128]{1,0:T(1,128)}', space=vmem, size = 0x12000, scoped, tag = 'internal scratch']
  #allocation2 [shape = 'f32[1,1]{1,0:T(1,128)S(1)}', space=vmem, size = 0x200, scoped, tag = 'scoped memory for tpu_custom_call.1']
  %s0 = inlined_call_operand.hbm [shape: s32[8,128], index: 0, kind: input, shape index: {}]
  %s1 = inlined_call_operand.vmem [shape: f32[2,1,32], index: 1, kind: input, shape index: {}]
  %s2 = inlined_call_operand.<no memory space> [shape: f32[1,1], index: 2, kind: input, shape index: {}]
  %s3 = inlined_call_operand.hbm [shape: f32[1,128], index: 3, kind: output, shape index: {}]
  %s4 = sld [smem:[#allocation0]]
  $region26: #{tpu_custom_call.1} parent=0
    _
  %s6 = ssub.s32 1, %s4
  %s7 = scalar_select 0, %s6, %s4
  %v8 = vstv %s2
  %9 = vst [vmem:[#allocation2] sm:$0x1] %v8
  $region1: #{tpu_custom_call.1} parent=0
    #allocation3 [shape = 'u8[4096]{0}', space=vmem, size = 0x1000, scoped, tag = 'input window, operand 0, single buffered']
    #allocation4 [shape = 's32[1]{0}', space=sflag, size = 0x4, scoped, tag = 'scoped memory for tpu_custom_call.1']
    #allocation5 [shape = 's32[1]{0}', space=sflag, size = 0x4, scoped, tag = 'scoped memory for tpu_custom_call.1']
    #allocation6 [shape = 'u8[512]{0}', space=vmem, size = 0x400, scoped, tag = 'output window, operand 0, single buffered']
    %10 = vsyncpa [#allocation4], 0
    %11 = vsyncpa [#allocation5], 0
    // Predicated region
    $region2: #{tpu_custom_call.1} parent=1 // pred_check
      _
    $region3: #{tpu_custom_call.1} parent=1 // pred_check_branch
      %13 = sbr.rel (0) target = $region5
    $region4: #{tpu_custom_call.1} parent=1 // pred_region
      %s15 = ssub.s32 128, 128
      %16 = vsyncadd [#allocation4], %s15
      %s18 = sshll.u32 [#allocation3], 4
      %s19 = int_to_ptr.vmem [resolvable:$true] %s18
      %21 = dma.hbm_to_vmem [thread:$0]  %s0, 128, %s19, [#allocation4]
    $region5: #{tpu_custom_call.1} parent=1 // pred_fallthru
      _
    // Predicated region
    $region6: #{tpu_custom_call.1} parent=1 // pred_check
      _
    $region7: #{tpu_custom_call.1} parent=1 // pred_check_branch
      %23 = sbr.rel (0) target = $region9
    $region8: #{tpu_custom_call.1} parent=1 // pred_region
      _
    $region9: #{tpu_custom_call.1} parent=1 // pred_fallthru
      _
    // Predicated region
    $region10: #{tpu_custom_call.1} parent=1 // pred_check
      _
    $region11: #{tpu_custom_call.1} parent=1 // pred_check_branch
      %25 = sbr.rel (0) target = $region13
    $region12: #{tpu_custom_call.1} parent=1 // pred_region
      _
    $region13: #{tpu_custom_call.1} parent=1 // pred_fallthru
      _
    // Predicated region
    $region14: #{tpu_custom_call.1} parent=1 // pred_check
      _
    $region15: #{tpu_custom_call.1} parent=1 // pred_check_branch
      %27 = sbr.rel (0) target = $region17
    $region16: #{tpu_custom_call.1} parent=1 // pred_region
      %28 = dma.done [#allocation4], 128
    $region17: #{tpu_custom_call.1} parent=1 // pred_fallthru
      _
    %v29 = vlaneseq
    %v30 = vshrl.u32 %v29, 7
    %v31 = vadd.s32 %v30, 8
    %v32 = vadd.s32 %v30, 16
    %v33 = vadd.s32 %v30, 24
    %v34 = vld [vmem:[#allocation3] sm:$0x1]
    %v35 = vlaneseq
    %v36 = vshrl.u32 %v35, 7
    %v37 = vsub.s32 0, %v36
    %v38 = vrot.slane %v34, %v37
    %vm39 = vcmp.eq.s32.totalorder %v38, %v30
    %vm40 = vcmp.eq.s32.totalorder %v38, %v31
    %vm41 = vcmp.eq.s32.totalorder %v38, %v32
    %vm42 = vcmp.eq.s32.totalorder %v38, %v33
    %v43 = vsel %vm39, 1, 0
    %v44 = vsel %vm40, 1, 0
    %v45 = vsel %vm41, 1, 0
    %v46 = vsel %vm42, 1, 0
    %v47 = vld [vmem:[#allocation3 + $0x1] sm:$0x1]
    %v48 = vlaneseq
    %v49 = vshrl.u32 %v48, 7
    %v50 = vsub.s32 0, %v49
    %v51 = vrot.slane %v47, %v50
    %vm52 = vcmp.eq.s32.totalorder %v51, %v30
    %vm53 = vcmp.eq.s32.totalorder %v51, %v31
    %vm54 = vcmp.eq.s32.totalorder %v51, %v32
    %vm55 = vcmp.eq.s32.totalorder %v51, %v33
    %v56 = vsel %vm52, 1, 0
    %v57 = vsel %vm53, 1, 0
    %v58 = vsel %vm54, 1, 0
    %v59 = vsel %vm55, 1, 0
    %v60 = vadd.s32 %v43, %v56
    %v61 = vadd.s32 %v44, %v57
    %v62 = vadd.s32 %v45, %v58
    %v63 = vadd.s32 %v46, %v59
    %v64 = vld [vmem:[#allocation3 + $0x2] sm:$0x1]
    %v65 = vlaneseq
    %v66 = vshrl.u32 %v65, 7
    %v67 = vsub.s32 0, %v66
    %v68 = vrot.slane %v64, %v67
    %vm69 = vcmp.eq.s32.totalorder %v68, %v30
    %vm70 = vcmp.eq.s32.totalorder %v68, %v31
    %vm71 = vcmp.eq.s32.totalorder %v68, %v32
    %vm72 = vcmp.eq.s32.totalorder %v68, %v33
    %v73 = vsel %vm69, 1, 0
    %v74 = vsel %vm70, 1, 0
    %v75 = vsel %vm71, 1, 0
    %v76 = vsel %vm72, 1, 0
    %v77 = vadd.s32 %v60, %v73
    %v78 = vadd.s32 %v61, %v74
    %v79 = vadd.s32 %v62, %v75
    %v80 = vadd.s32 %v63, %v76
    %v81 = vld [vmem:[#allocation3 + $0x3] sm:$0x1]
    %v82 = vlaneseq
    %v83 = vshrl.u32 %v82, 7
    %v84 = vsub.s32 0, %v83
    %v85 = vrot.slane %v81, %v84
    %vm86 = vcmp.eq.s32.totalorder %v85, %v30
    %vm87 = vcmp.eq.s32.totalorder %v85, %v31
    %vm88 = vcmp.eq.s32.totalorder %v85, %v32
    %vm89 = vcmp.eq.s32.totalorder %v85, %v33
    %v90 = vsel %vm86, 1, 0
    %v91 = vsel %vm87, 1, 0
    %v92 = vsel %vm88, 1, 0
    %v93 = vsel %vm89, 1, 0
    %v94 = vadd.s32 %v77, %v90
    %v95 = vadd.s32 %v78, %v91
    %v96 = vadd.s32 %v79, %v92
    %v97 = vadd.s32 %v80, %v93
    %v98 = vld [vmem:[#allocation3 + $0x4] sm:$0x1]
    %v99 = vlaneseq
    %v100 = vshrl.u32 %v99, 7
    %v101 = vsub.s32 0, %v100
    %v102 = vrot.slane %v98, %v101
    %vm103 = vcmp.eq.s32.totalorder %v102, %v30
    %vm104 = vcmp.eq.s32.totalorder %v102, %v31
    %vm105 = vcmp.eq.s32.totalorder %v102, %v32
    %vm106 = vcmp.eq.s32.totalorder %v102, %v33
    %v107 = vsel %vm103, 1, 0
    %v108 = vsel %vm104, 1, 0
    %v109 = vsel %vm105, 1, 0
    %v110 = vsel %vm106, 1, 0
    %v111 = vadd.s32 %v94, %v107
    %v112 = vadd.s32 %v95, %v108
    %v113 = vadd.s32 %v96, %v109
    %v114 = vadd.s32 %v97, %v110
    %v115 = vld [vmem:[#allocation3 + $0x5] sm:$0x1]
    %v116 = vlaneseq
    %v117 = vshrl.u32 %v116, 7
    %v118 = vsub.s32 0, %v117
    %v119 = vrot.slane %v115, %v118
    %vm120 = vcmp.eq.s32.totalorder %v119, %v30
    %vm121 = vcmp.eq.s32.totalorder %v119, %v31
    %vm122 = vcmp.eq.s32.totalorder %v119, %v32
    %vm123 = vcmp.eq.s32.totalorder %v119, %v33
    %v124 = vsel %vm120, 1, 0
    %v125 = vsel %vm121, 1, 0
    %v126 = vsel %vm122, 1, 0
    %v127 = vsel %vm123, 1, 0
    %v128 = vadd.s32 %v111, %v124
    %v129 = vadd.s32 %v112, %v125
    %v130 = vadd.s32 %v113, %v126
    %v131 = vadd.s32 %v114, %v127
    %v132 = vld [vmem:[#allocation3 + $0x6] sm:$0x1]
    %v133 = vlaneseq
    %v134 = vshrl.u32 %v133, 7
    %v135 = vsub.s32 0, %v134
    %v136 = vrot.slane %v132, %v135
    %vm137 = vcmp.eq.s32.totalorder %v136, %v30
    %vm138 = vcmp.eq.s32.totalorder %v136, %v31
    %vm139 = vcmp.eq.s32.totalorder %v136, %v32
    %vm140 = vcmp.eq.s32.totalorder %v136, %v33
    %v141 = vsel %vm137, 1, 0
    %v142 = vsel %vm138, 1, 0
    %v143 = vsel %vm139, 1, 0
    %v144 = vsel %vm140, 1, 0
    %v145 = vadd.s32 %v128, %v141
    %v146 = vadd.s32 %v129, %v142
    %v147 = vadd.s32 %v130, %v143
    %v148 = vadd.s32 %v131, %v144
    %v149 = vld [vmem:[#allocation3 + $0x7] sm:$0x1]
    %v150 = vlaneseq
    %v151 = vshrl.u32 %v150, 7
    %v152 = vsub.s32 0, %v151
    %v153 = vrot.slane %v149, %v152
    %vm154 = vcmp.eq.s32.totalorder %v153, %v30
    %vm155 = vcmp.eq.s32.totalorder %v153, %v31
    %vm156 = vcmp.eq.s32.totalorder %v153, %v32
    %vm157 = vcmp.eq.s32.totalorder %v153, %v33
    %v158 = vsel %vm154, 1, 0
    %v159 = vsel %vm155, 1, 0
    %v160 = vsel %vm156, 1, 0
    %v161 = vsel %vm157, 1, 0
    %v162 = vadd.s32 %v145, %v158
    %v163 = vadd.s32 %v146, %v159
    %v164 = vadd.s32 %v147, %v160
    %v165 = vadd.s32 %v148, %v161
    %v166 = vld [vmem:[%s1] sm:$0x1]
    %v167 = vcvt.s32.f32 %v162
    %v168 = vcvt.s32.f32 %v163
    %v169 = vcvt.s32.f32 %v164
    %v170 = vcvt.s32.f32 %v165
    %v171 = vadd.s32 %v30, 32
    %v172 = vadd.s32 %v31, 32
    %v173 = vadd.s32 %v32, 32
    %v174 = vadd.s32 %v33, 32
    %vm175 = vcmp.eq.s32.totalorder %v38, %v171
    %vm176 = vcmp.eq.s32.totalorder %v38, %v172
    %vm177 = vcmp.eq.s32.totalorder %v38, %v173
    %vm178 = vcmp.eq.s32.totalorder %v38, %v174
    %v179 = vsel %vm175, 1, 0
    %v180 = vsel %vm176, 1, 0
    %v181 = vsel %vm177, 1, 0
    %v182 = vsel %vm178, 1, 0
    %vm183 = vcmp.eq.s32.totalorder %v51, %v171
    %vm184 = vcmp.eq.s32.totalorder %v51, %v172
    %vm185 = vcmp.eq.s32.totalorder %v51, %v173
    %vm186 = vcmp.eq.s32.totalorder %v51, %v174
    %v187 = vsel %vm183, 1, 0
    %v188 = vsel %vm184, 1, 0
    %v189 = vsel %vm185, 1, 0
    %v190 = vsel %vm186, 1, 0
    %v191 = vadd.s32 %v179, %v187
    %v192 = vadd.s32 %v180, %v188
    %v193 = vadd.s32 %v181, %v189
    %v194 = vadd.s32 %v182, %v190
    %vm195 = vcmp.eq.s32.totalorder %v68, %v171
    %vm196 = vcmp.eq.s32.totalorder %v68, %v172
    %vm197 = vcmp.eq.s32.totalorder %v68, %v173
    %vm198 = vcmp.eq.s32.totalorder %v68, %v174
    %v199 = vsel %vm195, 1, 0
    %v200 = vsel %vm196, 1, 0
    %v201 = vsel %vm197, 1, 0
    %v202 = vsel %vm198, 1, 0
    %v203 = vadd.s32 %v191, %v199
    %v204 = vadd.s32 %v192, %v200
    %v205 = vadd.s32 %v193, %v201
    %v206 = vadd.s32 %v194, %v202
    %vm207 = vcmp.eq.s32.totalorder %v85, %v171
    %vm208 = vcmp.eq.s32.totalorder %v85, %v172
    %vm209 = vcmp.eq.s32.totalorder %v85, %v173
    %vm210 = vcmp.eq.s32.totalorder %v85, %v174
    %v211 = vsel %vm207, 1, 0
    %v212 = vsel %vm208, 1, 0
    %v213 = vsel %vm209, 1, 0
    %v214 = vsel %vm210, 1, 0
    %v215 = vadd.s32 %v203, %v211
    %v216 = vadd.s32 %v204, %v212
    %v217 = vadd.s32 %v205, %v213
    %v218 = vadd.s32 %v206, %v214
    %vm219 = vcmp.eq.s32.totalorder %v102, %v171
    %vm220 = vcmp.eq.s32.totalorder %v102, %v172
    %vm221 = vcmp.eq.s32.totalorder %v102, %v173
    %vm222 = vcmp.eq.s32.totalorder %v102, %v174
    %v223 = vsel %vm219, 1, 0
    %v224 = vsel %vm220, 1, 0
    %v225 = vsel %vm221, 1, 0
    %v226 = vsel %vm222, 1, 0
    %v227 = vadd.s32 %v215, %v223
    %v228 = vadd.s32 %v216, %v224
    %v229 = vadd.s32 %v217, %v225
    %v230 = vadd.s32 %v218, %v226
    %vm231 = vcmp.eq.s32.totalorder %v119, %v171
    %vm232 = vcmp.eq.s32.totalorder %v119, %v172
    %vm233 = vcmp.eq.s32.totalorder %v119, %v173
    %vm234 = vcmp.eq.s32.totalorder %v119, %v174
    %v235 = vsel %vm231, 1, 0
    %v236 = vsel %vm232, 1, 0
    %v237 = vsel %vm233, 1, 0
    %v238 = vsel %vm234, 1, 0
    %v239 = vadd.s32 %v227, %v235
    %v240 = vadd.s32 %v228, %v236
    %v241 = vadd.s32 %v229, %v237
    %v242 = vadd.s32 %v230, %v238
    %vm243 = vcmp.eq.s32.totalorder %v136, %v171
    %vm244 = vcmp.eq.s32.totalorder %v136, %v172
    %vm245 = vcmp.eq.s32.totalorder %v136, %v173
    %vm246 = vcmp.eq.s32.totalorder %v136, %v174
    %v247 = vsel %vm243, 1, 0
    %v248 = vsel %vm244, 1, 0
    %v249 = vsel %vm245, 1, 0
    %v250 = vsel %vm246, 1, 0
    %v251 = vadd.s32 %v239, %v247
    %v252 = vadd.s32 %v240, %v248
    %v253 = vadd.s32 %v241, %v249
    %v254 = vadd.s32 %v242, %v250
    %vm255 = vcmp.eq.s32.totalorder %v153, %v171
    %vm256 = vcmp.eq.s32.totalorder %v153, %v172
    %vm257 = vcmp.eq.s32.totalorder %v153, %v173
    %vm258 = vcmp.eq.s32.totalorder %v153, %v174
    %v259 = vsel %vm255, 1, 0
    %v260 = vsel %vm256, 1, 0
    %v261 = vsel %vm257, 1, 0
    %v262 = vsel %vm258, 1, 0
    %v263 = vadd.s32 %v251, %v259
    %v264 = vadd.s32 %v252, %v260
    %v265 = vadd.s32 %v253, %v261
    %v266 = vadd.s32 %v254, %v262
    %s267 = scalar_lea.vmem %s1, 1
    %v268 = vld [vmem:[%s267] sm:$0x1]
    %v269 = vcvt.s32.f32 %v263
    %v270 = vcvt.s32.f32 %v264
    %v271 = vcvt.s32.f32 %v265
    %v272 = vcvt.s32.f32 %v266
    %vm273 = vcmask 261120
    %v275 = vsel %vm273, %v268, 0
    %277 = vmatprep.subr.mxu0 0.0
    %278 = vmatpush1.msra.mxu0 %v269
    %279 = vmatprep.subr.mxu0 0.0
    %280 = vmatpush1.msra.mxu0 %v270
    %281 = vmatprep.subr.mxu0 0.0
    %282 = vmatpush1.msra.mxu0 %v271
    %283 = vmatprep.subr.mxu0 0.0
    %284 = vmatpush1.msra.mxu0 %v272
    %285 = vmatprep.subr.mxu0 0.0
    %286 = vmatpush1.msra.mxu0 0.0
    %287 = vmatprep.subr.mxu0 0.0
    %288 = vmatpush1.msra.mxu0 0.0
    %289 = vmatprep.subr.mxu0 0.0
    %290 = vmatpush1.msra.mxu0 0.0
    %291 = vmatprep.subr.mxu0 0.0
    %292 = vmatpush1.msra.mxu0 0.0
    %293 = vmatprep.subr.mxu0 0.0
    %294 = vmatpush1.msra.mxu0 0.0
    %295 = vmatprep.subr.mxu0 0.0
    %296 = vmatpush1.msra.mxu0 0.0
    %297 = vmatprep.subr.mxu0 0.0
    %298 = vmatpush1.msra.mxu0 0.0
    %299 = vmatprep.subr.mxu0 0.0
    %300 = vmatpush1.msra.mxu0 0.0
    %301 = vmatprep.subr.mxu0 0.0
    %302 = vmatpush1.msra.mxu0 0.0
    %303 = vmatprep.subr.mxu0 0.0
    %304 = vmatpush1.msra.mxu0 0.0
    %305 = vmatprep.subr.mxu0 0.0
    %306 = vmatpush1.msra.mxu0 0.0
    %307 = vmatprep.subr.mxu0 0.0
    %308 = vmatpush1.msra.mxu0 0.0
    %309 = vmatprep.subr.mxu0 0.0
    %310 = vmatpush1.msra.mxu0 0.0
    %311 = vmatprep.subr.mxu0 0.0
    %312 = vmatpush1.msra.mxu0 0.0
    %313 = vmatprep.subr.mxu0 0.0
    %314 = vmatpush1.msra.mxu0 0.0
    %315 = vmatprep.subr.mxu0 0.0
    %316 = vmatpush1.msra.mxu0 0.0
    %317 = vmatprep.subr.mxu0 0.0
    %318 = vmatpush1.msra.mxu0 0.0
    %319 = vmatprep.subr.mxu0 0.0
    %320 = vmatpush1.msra.mxu0 0.0
    %321 = vmatprep.subr.mxu0 0.0
    %322 = vmatpush1.msra.mxu0 0.0
    %323 = vmatprep.subr.mxu0 0.0
    %324 = vmatpush1.msra.mxu0 0.0
    %325 = vmatprep.subr.mxu0 0.0
    %326 = vmatpush1.msra.mxu0 0.0
    %327 = vmatprep.subr.mxu0 0.0
    %328 = vmatpush1.msra.mxu0 0.0
    %329 = vmatprep.subr.mxu0 0.0
    %330 = vmatpush1.msra.mxu0 0.0
    %331 = vmatprep.subr.mxu0 0.0
    %332 = vmatpush1.msra.mxu0 0.0
    %333 = vmatprep.subr.mxu0 0.0
    %334 = vmatpush1.msra.mxu0 0.0
    %335 = vmatprep.subr.mxu0 0.0
    %336 = vmatpush1.msra.mxu0 0.0
    %337 = vmatprep.subr.mxu0 0.0
    %338 = vmatpush1.msra.mxu0 0.0
    %339 = vmatprep.subr.mxu0 0.0
    %340 = vmatpush1.msra.mxu0 0.0
    %341 = vmatprep.mubr.f32.mxu0 0.0
    %342 = vmatmul.mubr.f32.gmra.mrb[0].mxu0 %v275
    %v343 = vpop.f32.mrb[0].mxu0
    %v344 = vadd.f32 0.0, %v343
    %v345 = vpop.f32.mrb[0].mxu0
    %346 = vdwg.mxu0
    %v348 = vsel %vm273, %v166, 0
    %350 = vmatprep.subr.mxu0 0.0
    %351 = vmatpush1.msra.mxu0 %v167
    %352 = vmatprep.subr.mxu0 0.0
    %353 = vmatpush1.msra.mxu0 %v168
    %354 = vmatprep.subr.mxu0 0.0
    %355 = vmatpush1.msra.mxu0 %v169
    %356 = vmatprep.subr.mxu0 0.0
    %357 = vmatpush1.msra.mxu0 %v170
    %358 = vmatprep.subr.mxu0 0.0
    %359 = vmatpush1.msra.mxu0 0.0
    %360 = vmatprep.subr.mxu0 0.0
    %361 = vmatpush1.msra.mxu0 0.0
    %362 = vmatprep.subr.mxu0 0.0
    %363 = vmatpush1.msra.mxu0 0.0
    %364 = vmatprep.subr.mxu0 0.0
    %365 = vmatpush1.msra.mxu0 0.0
    %366 = vmatprep.subr.mxu0 0.0
    %367 = vmatpush1.msra.mxu0 0.0
    %368 = vmatprep.subr.mxu0 0.0
    %369 = vmatpush1.msra.mxu0 0.0
    %370 = vmatprep.subr.mxu0 0.0
    %371 = vmatpush1.msra.mxu0 0.0
    %372 = vmatprep.subr.mxu0 0.0
    %373 = vmatpush1.msra.mxu0 0.0
    %374 = vmatprep.subr.mxu0 0.0
    %375 = vmatpush1.msra.mxu0 0.0
    %376 = vmatprep.subr.mxu0 0.0
    %377 = vmatpush1.msra.mxu0 0.0
    %378 = vmatprep.subr.mxu0 0.0
    %379 = vmatpush1.msra.mxu0 0.0
    %380 = vmatprep.subr.mxu0 0.0
    %381 = vmatpush1.msra.mxu0 0.0
    %382 = vmatprep.subr.mxu0 0.0
    %383 = vmatpush1.msra.mxu0 0.0
    %384 = vmatprep.subr.mxu0 0.0
    %385 = vmatpush1.msra.mxu0 0.0
    %386 = vmatprep.subr.mxu0 0.0
    %387 = vmatpush1.msra.mxu0 0.0
    %388 = vmatprep.subr.mxu0 0.0
    %389 = vmatpush1.msra.mxu0 0.0
    %390 = vmatprep.subr.mxu0 0.0
    %391 = vmatpush1.msra.mxu0 0.0
    %392 = vmatprep.subr.mxu0 0.0
    %393 = vmatpush1.msra.mxu0 0.0
    %394 = vmatprep.subr.mxu0 0.0
    %395 = vmatpush1.msra.mxu0 0.0
    %396 = vmatprep.subr.mxu0 0.0
    %397 = vmatpush1.msra.mxu0 0.0
    %398 = vmatprep.subr.mxu0 0.0
    %399 = vmatpush1.msra.mxu0 0.0
    %400 = vmatprep.subr.mxu0 0.0
    %401 = vmatpush1.msra.mxu0 0.0
    %402 = vmatprep.subr.mxu0 0.0
    %403 = vmatpush1.msra.mxu0 0.0
    %404 = vmatprep.subr.mxu0 0.0
    %405 = vmatpush1.msra.mxu0 0.0
    %406 = vmatprep.subr.mxu0 0.0
    %407 = vmatpush1.msra.mxu0 0.0
    %408 = vmatprep.subr.mxu0 0.0
    %409 = vmatpush1.msra.mxu0 0.0
    %410 = vmatprep.subr.mxu0 0.0
    %411 = vmatpush1.msra.mxu0 0.0
    %412 = vmatprep.subr.mxu0 0.0
    %413 = vmatpush1.msra.mxu0 0.0
    %414 = vmatprep.mubr.f32.mxu0 0.0
    %415 = vmatmul.mubr.f32.gmra.mrb[0].mxu0 %v348
    %v416 = vpop.f32.mrb[0].mxu0
    %v417 = vadd.f32 %v344, %v416
    %v418 = vpop.f32.mrb[0].mxu0
    %419 = vdwg.mxu0
    %v420 = vld [vmem:[#allocation2] sm:$0x1]
    %422 = vset.pattern.permute.xlu0 0
    %423 = vperm.xlu0 %422, %v420
    %v424 = vpop.permute.xlu0 %423
    %v426 = vlaneseq
    %v427 = vshrl.u32 %v426, 7
    %v428 = vsub.s32 0, %v427
    %v429 = vrot.slane %v424, %v428
    %v430 = vadd.f32 %v417, %v429
    %431 = vst [vmem:[#allocation6] sm:$0x1] %v430
    // Predicated region
    $region18: #{tpu_custom_call.1} parent=1 // pred_check
      _
    $region19: #{tpu_custom_call.1} parent=1 // pred_check_branch
      %433 = sbr.rel (0) target = $region21
    $region20: #{tpu_custom_call.1} parent=1 // pred_region
      %s435 = ssub.s32 16, 16
      %436 = vsyncadd [#allocation5], %s435
      %s438 = sshll.u32 [#allocation6], 4
      %s439 = int_to_ptr.vmem [resolvable:$true] %s438
      %441 = dma.vmem_to_hbm [thread:$0]  %s439, 16, %s3, [#allocation5]
    $region21: #{tpu_custom_call.1} parent=1 // pred_fallthru
      _
    // Predicated region
    $region22: #{tpu_custom_call.1} parent=1 // pred_check
      _
    $region23: #{tpu_custom_call.1} parent=1 // pred_check_branch
      %443 = sbr.rel (0) target = $region25
    $region24: #{tpu_custom_call.1} parent=1 // pred_region
      %444 = dma.done [#allocation5], 16
    $region25: #{tpu_custom_call.1} parent=1 // pred_fallthru
      _
    %445 = vsyncpa [#allocation4], 1
    %446 = vsyncpa [#allocation5], 1

</llo_original>
